<compile_context>
chip_gen: v6e
topology: v6e:2x2x1
jax: 0.10.0
libtpu: 0.0.40
codegen_flags: <defaults>
</compile_context>

<pallas_src>
import jax
import jax.numpy as jnp
from jax import lax
from jax.experimental import pallas as pl
from jax.experimental.pallas import tpu as pltpu


def rnn_seq_kernel(xproj_ref,   # (TS, Bb, H) f32  pre-projected inputs for this time chunk
                   wcomb_ref,   # (H, H)  bf16     W2^T @ Wh^T (folded recurrent matmul)
                   w2t_ref,     # (H, H)  bf16     W2^T (used once, for the final hidden)
                   b2_ref,      # (1, H)  f32
                   wout_ref,    # (1, H)  f32      W2^T @ w3^T as a row (output head)
                   b3_ref,      # (1, 1)  f32      b3 + b2 @ w3^T
                   sig_ref,     # out (1, 1, TS, Bb) f32  per-step sigmoids for this chunk
                   hid_ref,     # out (Bb, H) f32  final hidden (written at last time chunk)
                   x_carry):    # scratch VMEM (Bb, H) f32: carried tanh activation
    t = pl.program_id(1)                      # time-chunk index (arbitrary axis)

    @pl.when(t == 0)
    def _init():
        # x_0 := 0  (h0 @ Wh^T was folded into xproj[0] on the host).
        x_carry[...] = jnp.zeros_like(x_carry)

    ts = xproj_ref.shape[0]
    wcomb = wcomb_ref[...]                    # resident bf16 (H, H)
    x = x_carry[...]                          # (Bb, H) f32

    # Static, fully-unrolled time loop (== lax.fori_loop(..., unroll=True) at
    # static TS); the only serially-dependent work per step is one bf16 MXU
    # matmul + a tanh.
    xs = []
    for s in range(ts):
        pre = xproj_ref[s] + jnp.dot(x.astype(jnp.bfloat16), wcomb,
                                     preferred_element_type=jnp.float32)
        x = jnp.tanh(pre)                     # f32 activations (EUP path, v5e-safe)
        xs.append(x)
    x_carry[...] = x

    # Output head, off the serial chain: one fused VPU multiply + lane reduce
    # for all TS steps, then a single coalesced (TS, Bb) store per chunk.
    xs_all = jnp.stack(xs, axis=0)                                   # (TS, Bb, H)
    logits = jnp.sum(xs_all * wout_ref[...][None], axis=-1) + b3_ref[...]  # (TS, Bb)
    sig_ref[...] = jax.nn.sigmoid(logits)[None, None]

    # hidden_T = x_T @ W2^T + b2 is only needed once, at the very end.
    @pl.when(t == pl.num_programs(1) - 1)
    def _finalize():
        hid_ref[...] = (jnp.dot(x.astype(jnp.bfloat16), w2t_ref[...],
                                preferred_element_type=jnp.float32)
                        + b2_ref[...])


def init_params(key, input_size, hidden_size):
    """Deterministic init matching nn.Linear shapes (out_features, in_features)."""
    k1, k2, k3, k4, k5, k6 = jax.random.split(key, 6)

    def lin(kw, kb, in_f, out_f):
        bound = 1.0 / jnp.sqrt(in_f)
        w = jax.random.uniform(kw, (out_f, in_f), jnp.float32, -bound, bound)
        b = jax.random.uniform(kb, (out_f,), jnp.float32, -bound, bound)
        return w, b

    w1, b1 = lin(k1, k2, input_size + hidden_size, hidden_size)
    w2, b2 = lin(k3, k4, hidden_size, hidden_size)
    w3, b3 = lin(k5, k6, hidden_size, 1)
    return (w1, b1, w2, b2, w3, b3)


def prepare_params(params, input_size):
    """One-time parameter prep (hoisted out of the recurrence):
      - split W1 into input (Wx) and recurrent (Wh) halves, pre-transpose,
      - re-associate: W_comb = W2^T @ Wh^T, w_out = W2^T @ w3^T,
        bias folds b2 @ Wh^T and b2 @ w3^T + b3,
      - cast MXU-path weights to bf16 (f32 accumulation in-kernel)."""
    w1, b1, w2, b2, w3, b3 = params
    H = w2.shape[0]
    hp = lax.Precision.HIGHEST                 # one-time, negligible cost
    wx_t = w1[:, :input_size].T                # (I, H)
    wh_t = w1[:, input_size:].T                # (H, H)
    w2_t = w2.T                                # (H, H)
    w3_vec = w3.reshape(H)
    w_comb = jnp.dot(w2_t, wh_t, precision=hp)             # (H, H)
    wout = jnp.dot(w2_t, w3_vec, precision=hp)              # (H,)
    return {
        "wx_t": wx_t,
        "wh_t": wh_t,                                        # host-side fold of h0 only
        "b1": b1,                                            # (H,)
        "bias_rec": jnp.dot(b2, wh_t, precision=hp),         # (H,)  b2 @ Wh^T
        "w_comb_bf16": w_comb.astype(jnp.bfloat16),
        "w2_t_bf16": w2_t.astype(jnp.bfloat16),
        "b2_row": b2.reshape(1, H),
        "wout_row": wout.reshape(1, H),
        "b3_fold": (jnp.dot(b2, w3_vec, precision=hp) + b3[0]).reshape(1, 1),
    }


def _pick_divisor(n, requested):
    d = min(max(int(requested), 1), n)
    while n % d:
        d -= 1
    return d


def _pick_batch_block(B, requested):
    if B % 8 != 0:
        return B                 # single batch block: block dim == full array dim
    bb = min(max(int(requested), 8), B)
    bb -= bb % 8
    while B % bb:
        bb -= 8
    return bb


def rnn_sequence(inputs, h0, prepped, *, ts=8, b_blk=8):
    """Run the recurrence over a whole sequence in one pallas_call.

    inputs: (T, B, I)  time-major batched inputs
    h0:     (B, H)     initial hidden state
    returns (sig_all (T, B), h_final (B, H))
    """
    T, B, _ = inputs.shape
    H = h0.shape[-1]
    ts = _pick_divisor(T, ts)
    b_blk = _pick_batch_block(B, b_blk)
    nt, nb = T // ts, B // b_blk

    # Hoisted input projection: one big matmul at default precision (matches the
    # in-kernel MXU precision).  Stream kept f32 here; cast to bf16 for very
    # long sequences to halve the per-chunk HBM traffic.
    xproj = jnp.dot(inputs, prepped["wx_t"]) + prepped["b1"]          # (T, B, H)
    # Fold the given initial hidden's recurrent term into step 0 and the folded
    # bias b2 @ Wh^T into steps 1..T-1, so the kernel's per-step serial chain is
    # only x_{t-1} @ W_comb.
    xproj = xproj.at[0].add(jnp.dot(h0, prepped["wh_t"]))
    if T > 1:
        xproj = xproj.at[1:].add(prepped["bias_rec"])

    def const(shape):
        return pl.BlockSpec(shape, lambda b, t: (0,) * len(shape))

    sig4, h_final = pl.pallas_call(
        rnn_seq_kernel,
        out_shape=(
            jax.ShapeDtypeStruct((nb, nt, ts, b_blk), jnp.float32),
            jax.ShapeDtypeStruct((B, H), jnp.float32),
        ),
        grid=(nb, nt),                       # (batch blocks, time chunks)
        in_specs=[
            pl.BlockSpec((ts, b_blk, H), lambda b, t: (t, b, 0)),   # per-chunk xproj
            const((H, H)),    # W_comb^T  bf16, resident for the whole grid
            const((H, H)),    # W2^T      bf16, resident
            const((1, H)),    # b2
            const((1, H)),    # w_out row
            const((1, 1)),    # b3 fold
        ],
        out_specs=(
            pl.BlockSpec((1, 1, ts, b_blk), lambda b, t: (b, t, 0, 0)),
            pl.BlockSpec((b_blk, H), lambda b, t: (b, 0)),
        ),
        scratch_shapes=[pltpu.VMEM((b_blk, H), jnp.float32)],
        # Batch axis parallel (v7x megacore), time axis is the carried recurrence.
        compiler_params=pltpu.CompilerParams(
            dimension_semantics=("parallel", "arbitrary")),
    )(xproj, prepped["w_comb_bf16"], prepped["w2_t_bf16"], prepped["b2_row"],
      prepped["wout_row"], prepped["b3_fold"])

    # Layout plumbing back to (T, B): (nb, nt, ts, b_blk) -> (nt, ts, nb, b_blk).
    sig = jnp.transpose(sig4, (1, 2, 0, 3)).reshape(T, B)
    return sig, h_final


def rnn_forward(inp, hidden, prepped):
    """Single-step forward matching the PyTorch module's signature:
    inp (I,), hidden (H,)  ->  (sigmoid_op (1,), hidden (H,))."""
    sig_all, h_final = rnn_sequence(inp.reshape(1, 1, -1), hidden.reshape(1, -1),
                                    prepped, ts=1, b_blk=1)
    return sig_all.reshape(1), h_final.reshape(-1)


def reference_sequence(inputs, h0, params):
    """Pure-JAX reference: iterate the module's forward over the sequence (f32, HIGHEST)."""
    w1, b1, w2, b2, w3, b3 = params
    hp = lax.Precision.HIGHEST
    T = inputs.shape[0]
    h = h0
    sigs = []
    for t in range(T):
        comb = jnp.concatenate([inputs[t], h], axis=-1)              # (B, I+H)
        x = jnp.tanh(jnp.dot(comb, w1.T, precision=hp) + b1)
        h = jnp.dot(x, w2.T, precision=hp) + b2
        out = jnp.dot(h, w3.T, precision=hp) + b3                    # (B, 1)
        sigs.append(jax.nn.sigmoid(out)[:, 0])
    return jnp.stack(sigs, axis=0), h


if __name__ == "__main__":
    input_size, hidden_size = 64, 128     # H multiple of 128 -> lane-dense hidden
    T, B = 16, 16                         # sequence length, batch
    TS, B_BLK = 8, 8                      # 8 timesteps per grid step, 8-row batch blocks

    key = jax.random.PRNGKey(0)
    kp, kx, kh, ks, kh2 = jax.random.split(key, 5)
    params = init_params(kp, input_size, hidden_size)
    prepped = prepare_params(params, input_size)

    inputs = jax.random.normal(kx, (T, B, input_size), jnp.float32)
    h0 = 0.1 * jax.random.normal(kh, (B, hidden_size), jnp.float32)

    run = jax.jit(rnn_sequence, static_argnames=("ts", "b_blk"))
    sig_all, h_final = run(inputs, h0, prepped, ts=TS, b_blk=B_BLK)
    jax.block_until_ready((sig_all, h_final))

    # --- reference check (bf16 MXU weights vs f32 HIGHEST reference -> looser tol) ---
    sig_ref, h_ref = reference_sequence(inputs, h0, params)
    assert sig_all.shape == (T, B) and h_final.shape == (B, hidden_size)
    assert jnp.allclose(sig_all, sig_ref, atol=5e-3), "sequence sigmoid mismatch"
    assert jnp.allclose(h_final, h_ref, atol=2e-2), "sequence hidden mismatch"

    # --- single-step module parity (same semantics as RNN.forward) ---
    x1 = jax.random.normal(ks, (input_size,), jnp.float32)
    h_single = 0.1 * jax.random.normal(kh2, (hidden_size,), jnp.float32)
    sig1, h1 = rnn_forward(x1, h_single, prepped)
    jax.block_until_ready((sig1, h1))

    w1, b1, w2, b2, w3, b3 = params
    hp = lax.Precision.HIGHEST
    comb = jnp.concatenate([x1, h_single])
    xr = jnp.tanh(jnp.dot(w1, comb, precision=hp) + b1)
    hr = jnp.dot(w2, xr, precision=hp) + b2
    sr = jax.nn.sigmoid(jnp.dot(w3, hr, precision=hp) + b3)
    assert jnp.allclose(h1, hr, atol=1e-2), "single-step hidden mismatch"
    assert jnp.allclose(sig1, sr, atol=5e-3), "single-step sigmoid mismatch"

    print("KERNEL_OK")
</pallas_src>

<mosaic_0001>
module attributes {stable_mosaic.version = 11 : i64} {
  func.func @rnn_seq_kernel(%arg0: i32, %arg1: i32, %arg2: memref<8x8x128xf32, #tpu.memory_space<vmem>>, %arg3: memref<128x128xbf16, #tpu.memory_space<vmem>>, %arg4: memref<128x128xbf16, #tpu.memory_space<vmem>>, %arg5: memref<1x128xf32, #tpu.memory_space<vmem>>, %arg6: memref<1x128xf32, #tpu.memory_space<vmem>>, %arg7: memref<1x1xf32, #tpu.memory_space<vmem>>, %arg8: memref<1x1x8x8xf32, #tpu.memory_space<vmem>>, %arg9: memref<8x128xf32, #tpu.memory_space<vmem>>, %arg10: memref<8x128xf32, #tpu.memory_space<vmem>>) attributes {dimension_semantics = [#tpu.dimension_semantics<parallel>, #tpu.dimension_semantics<arbitrary>], iteration_bounds = array<i64: 2, 2>, scalar_prefetch = 0 : i64, scratch_operands = 1 : i64, tpu.core_type = #tpu.core_type<tc>, window_params = [{transform_indices = @transform_0, window_bounds = array<i64: 8, 8, 128>}, {pipeline_mode = #tpu.pipeline_mode<synchronous>, transform_indices = @transform_1, window_bounds = array<i64: 128, 128>}, {pipeline_mode = #tpu.pipeline_mode<synchronous>, transform_indices = @transform_2, window_bounds = array<i64: 128, 128>}, {pipeline_mode = #tpu.pipeline_mode<synchronous>, transform_indices = @transform_3, window_bounds = array<i64: 1, 128>}, {pipeline_mode = #tpu.pipeline_mode<synchronous>, transform_indices = @transform_4, window_bounds = array<i64: 1, 128>}, {pipeline_mode = #tpu.pipeline_mode<synchronous>, transform_indices = @transform_5, window_bounds = array<i64: 1, 1>}, {transform_indices = @transform_6, window_bounds = array<i64: 1, 1, 8, 8>}, {transform_indices = @transform_7, window_bounds = array<i64: 8, 128>}]} {
    %c0_i32 = arith.constant 0 : i32
    %0 = arith.cmpi eq, %arg1, %c0_i32 : i32
    %1 = arith.extui %0 : i1 to i32
    %c0_i32_0 = arith.constant 0 : i32
    %2 = arith.cmpi ne, %1, %c0_i32_0 : i32
    scf.if %2 {
      %cst_41 = arith.constant 0.000000e+00 : f32
      %81 = vector.broadcast %cst_41 : f32 to vector<8x128xf32>
      %c0_42 = arith.constant 0 : index
      %c0_43 = arith.constant 0 : index
      %82 = vector.load %arg10[%c0_42, %c0_43] : memref<8x128xf32, #tpu.memory_space<vmem>>, vector<8x128xf32>
      tpu.vector_store %arg10[%c0_42, %c0_43], %81 {strides = array<i32>} : memref<8x128xf32, #tpu.memory_space<vmem>>, vector<8x128xf32>,
    } else {
    }
    %c0 = arith.constant 0 : index
    %c0_1 = arith.constant 0 : index
    %3 = vector.load %arg3[%c0, %c0_1] : memref<128x128xbf16, #tpu.memory_space<vmem>>, vector<128x128xbf16>
    %c0_2 = arith.constant 0 : index
    %c0_3 = arith.constant 0 : index
    %4 = vector.load %arg10[%c0_2, %c0_3] : memref<8x128xf32, #tpu.memory_space<vmem>>, vector<8x128xf32>
    %c0_4 = arith.constant 0 : index
    %c0_5 = arith.constant 0 : index
    %c0_6 = arith.constant 0 : index
    %5 = vector.load %arg2[%c0_4, %c0_5, %c0_6] : memref<8x8x128xf32, #tpu.memory_space<vmem>>, vector<1x8x128xf32>
    %6 = vector.shape_cast %5 : vector<1x8x128xf32> to vector<8x128xf32>
    %7 = arith.truncf %4 : vector<8x128xf32> to vector<8x128xbf16>
    %cst = arith.constant dense<0.000000e+00> : vector<8x128xf32>
    %8 = tpu.matmul %7, %3, %cst {dimension_numbers = #tpu.dot_dimension_numbers<[1], [0], [0], [1], [0, 0, 1, 1], [], []>} : vector<8x128xbf16>, vector<128x128xbf16>, vector<8x128xf32> -> vector<8x128xf32>
    %9 = arith.addf %6, %8 : vector<8x128xf32>
    %10 = math.tanh %9 : vector<8x128xf32>
    %c1 = arith.constant 1 : index
    %c0_7 = arith.constant 0 : index
    %c0_8 = arith.constant 0 : index
    %11 = vector.load %arg2[%c1, %c0_7, %c0_8] : memref<8x8x128xf32, #tpu.memory_space<vmem>>, vector<1x8x128xf32>
    %12 = vector.shape_cast %11 : vector<1x8x128xf32> to vector<8x128xf32>
    %13 = arith.truncf %10 : vector<8x128xf32> to vector<8x128xbf16>
    %cst_9 = arith.constant dense<0.000000e+00> : vector<8x128xf32>
    %14 = tpu.matmul %13, %3, %cst_9 {dimension_numbers = #tpu.dot_dimension_numbers<[1], [0], [0], [1], [0, 0, 1, 1], [], []>} : vector<8x128xbf16>, vector<128x128xbf16>, vector<8x128xf32> -> vector<8x128xf32>
    %15 = arith.addf %12, %14 : vector<8x128xf32>
    %16 = math.tanh %15 : vector<8x128xf32>
    %c2 = arith.constant 2 : index
    %c0_10 = arith.constant 0 : index
    %c0_11 = arith.constant 0 : index
    %17 = vector.load %arg2[%c2, %c0_10, %c0_11] : memref<8x8x128xf32, #tpu.memory_space<vmem>>, vector<1x8x128xf32>
    %18 = vector.shape_cast %17 : vector<1x8x128xf32> to vector<8x128xf32>
    %19 = arith.truncf %16 : vector<8x128xf32> to vector<8x128xbf16>
    %cst_12 = arith.constant dense<0.000000e+00> : vector<8x128xf32>
    %20 = tpu.matmul %19, %3, %cst_12 {dimension_numbers = #tpu.dot_dimension_numbers<[1], [0], [0], [1], [0, 0, 1, 1], [], []>} : vector<8x128xbf16>, vector<128x128xbf16>, vector<8x128xf32> -> vector<8x128xf32>
    %21 = arith.addf %18, %20 : vector<8x128xf32>
    %22 = math.tanh %21 : vector<8x128xf32>
    %c3 = arith.constant 3 : index
    %c0_13 = arith.constant 0 : index
    %c0_14 = arith.constant 0 : index
    %23 = vector.load %arg2[%c3, %c0_13, %c0_14] : memref<8x8x128xf32, #tpu.memory_space<vmem>>, vector<1x8x128xf32>
    %24 = vector.shape_cast %23 : vector<1x8x128xf32> to vector<8x128xf32>
    %25 = arith.truncf %22 : vector<8x128xf32> to vector<8x128xbf16>
    %cst_15 = arith.constant dense<0.000000e+00> : vector<8x128xf32>
    %26 = tpu.matmul %25, %3, %cst_15 {dimension_numbers = #tpu.dot_dimension_numbers<[1], [0], [0], [1], [0, 0, 1, 1], [], []>} : vector<8x128xbf16>, vector<128x128xbf16>, vector<8x128xf32> -> vector<8x128xf32>
    %27 = arith.addf %24, %26 : vector<8x128xf32>
    %28 = math.tanh %27 : vector<8x128xf32>
    %c4 = arith.constant 4 : index
    %c0_16 = arith.constant 0 : index
    %c0_17 = arith.constant 0 : index
    %29 = vector.load %arg2[%c4, %c0_16, %c0_17] : memref<8x8x128xf32, #tpu.memory_space<vmem>>, vector<1x8x128xf32>
    %30 = vector.shape_cast %29 : vector<1x8x128xf32> to vector<8x128xf32>
    %31 = arith.truncf %28 : vector<8x128xf32> to vector<8x128xbf16>
    %cst_18 = arith.constant dense<0.000000e+00> : vector<8x128xf32>
    %32 = tpu.matmul %31, %3, %cst_18 {dimension_numbers = #tpu.dot_dimension_numbers<[1], [0], [0], [1], [0, 0, 1, 1], [], []>} : vector<8x128xbf16>, vector<128x128xbf16>, vector<8x128xf32> -> vector<8x128xf32>
    %33 = arith.addf %30, %32 : vector<8x128xf32>
    %34 = math.tanh %33 : vector<8x128xf32>
    %c5 = arith.constant 5 : index
    %c0_19 = arith.constant 0 : index
    %c0_20 = arith.constant 0 : index
    %35 = vector.load %arg2[%c5, %c0_19, %c0_20] : memref<8x8x128xf32, #tpu.memory_space<vmem>>, vector<1x8x128xf32>
    %36 = vector.shape_cast %35 : vector<1x8x128xf32> to vector<8x128xf32>
    %37 = arith.truncf %34 : vector<8x128xf32> to vector<8x128xbf16>
    %cst_21 = arith.constant dense<0.000000e+00> : vector<8x128xf32>
    %38 = tpu.matmul %37, %3, %cst_21 {dimension_numbers = #tpu.dot_dimension_numbers<[1], [0], [0], [1], [0, 0, 1, 1], [], []>} : vector<8x128xbf16>, vector<128x128xbf16>, vector<8x128xf32> -> vector<8x128xf32>
    %39 = arith.addf %36, %38 : vector<8x128xf32>
    %40 = math.tanh %39 : vector<8x128xf32>
    %c6 = arith.constant 6 : index
    %c0_22 = arith.constant 0 : index
    %c0_23 = arith.constant 0 : index
    %41 = vector.load %arg2[%c6, %c0_22, %c0_23] : memref<8x8x128xf32, #tpu.memory_space<vmem>>, vector<1x8x128xf32>
    %42 = vector.shape_cast %41 : vector<1x8x128xf32> to vector<8x128xf32>
    %43 = arith.truncf %40 : vector<8x128xf32> to vector<8x128xbf16>
    %cst_24 = arith.constant dense<0.000000e+00> : vector<8x128xf32>
    %44 = tpu.matmul %43, %3, %cst_24 {dimension_numbers = #tpu.dot_dimension_numbers<[1], [0], [0], [1], [0, 0, 1, 1], [], []>} : vector<8x128xbf16>, vector<128x128xbf16>, vector<8x128xf32> -> vector<8x128xf32>
    %45 = arith.addf %42, %44 : vector<8x128xf32>
    %46 = math.tanh %45 : vector<8x128xf32>
    %c7 = arith.constant 7 : index
    %c0_25 = arith.constant 0 : index
    %c0_26 = arith.constant 0 : index
    %47 = vector.load %arg2[%c7, %c0_25, %c0_26] : memref<8x8x128xf32, #tpu.memory_space<vmem>>, vector<1x8x128xf32>
    %48 = vector.shape_cast %47 : vector<1x8x128xf32> to vector<8x128xf32>
    %49 = arith.truncf %46 : vector<8x128xf32> to vector<8x128xbf16>
    %cst_27 = arith.constant dense<0.000000e+00> : vector<8x128xf32>
    %50 = tpu.matmul %49, %3, %cst_27 {dimension_numbers = #tpu.dot_dimension_numbers<[1], [0], [0], [1], [0, 0, 1, 1], [], []>} : vector<8x128xbf16>, vector<128x128xbf16>, vector<8x128xf32> -> vector<8x128xf32>
    %51 = arith.addf %48, %50 : vector<8x128xf32>
    %52 = math.tanh %51 : vector<8x128xf32>
    %c0_28 = arith.constant 0 : index
    %c0_29 = arith.constant 0 : index
    %53 = vector.load %arg10[%c0_28, %c0_29] : memref<8x128xf32, #tpu.memory_space<vmem>>, vector<8x128xf32>
    tpu.vector_store %arg10[%c0_28, %c0_29], %52 {strides = array<i32>} : memref<8x128xf32, #tpu.memory_space<vmem>>, vector<8x128xf32>,
    %54 = vector.shape_cast %10 : vector<8x128xf32> to vector<1x8x128xf32>
    %55 = vector.shape_cast %16 : vector<8x128xf32> to vector<1x8x128xf32>
    %56 = vector.shape_cast %22 : vector<8x128xf32> to vector<1x8x128xf32>
    %57 = vector.shape_cast %28 : vector<8x128xf32> to vector<1x8x128xf32>
    %58 = vector.shape_cast %34 : vector<8x128xf32> to vector<1x8x128xf32>
    %59 = vector.shape_cast %40 : vector<8x128xf32> to vector<1x8x128xf32>
    %60 = vector.shape_cast %46 : vector<8x128xf32> to vector<1x8x128xf32>
    %61 = vector.shape_cast %52 : vector<8x128xf32> to vector<1x8x128xf32>
    %62 = tpu.concatenate %54, %55, %56, %57, %58, %59, %60, %61 in 0 : vector<1x8x128xf32>, vector<1x8x128xf32>, vector<1x8x128xf32>, vector<1x8x128xf32>, vector<1x8x128xf32>, vector<1x8x128xf32>, vector<1x8x128xf32>, vector<1x8x128xf32> -> vector<8x8x128xf32>
    %c0_30 = arith.constant 0 : index
    %c0_31 = arith.constant 0 : index
    %63 = vector.load %arg6[%c0_30, %c0_31] : memref<1x128xf32, #tpu.memory_space<vmem>>, vector<1x128xf32>
    %64 = vector.shape_cast %63 : vector<1x128xf32> to vector<1x1x128xf32>
    %65 = vector.broadcast %64 : vector<1x1x128xf32> to vector<8x8x128xf32>
    %66 = arith.mulf %62, %65 : vector<8x8x128xf32>
    %cst_32 = arith.constant dense<0.000000e+00> : vector<8x8xf32>
    %67 = vector.multi_reduction <add>, %66, %cst_32 [2] : vector<8x8x128xf32> to vector<8x8xf32>
    %c0_33 = arith.constant 0 : index
    %c0_34 = arith.constant 0 : index
    %68 = vector.load %arg7[%c0_33, %c0_34] : memref<1x1xf32, #tpu.memory_space<vmem>>, vector<1x1xf32>
    %69 = vector.broadcast %68 : vector<1x1xf32> to vector<8x8xf32>
    %70 = arith.addf %67, %69 : vector<8x8xf32>
    %71 = arith.negf %70 : vector<8x8xf32>
    %72 = math.exp %71 : vector<8x8xf32>
    %cst_35 = arith.constant 1.000000e+00 : f32
    %73 = vector.broadcast %cst_35 : f32 to vector<8x8xf32>
    %74 = arith.addf %73, %72 : vector<8x8xf32>
    %75 = arith.divf %73, %74 : vector<8x8xf32>
    %76 = vector.shape_cast %75 : vector<8x8xf32> to vector<1x1x8x8xf32>
    %c0_36 = arith.constant 0 : index
    %c0_37 = arith.constant 0 : index
    %c0_38 = arith.constant 0 : index
    %c0_39 = arith.constant 0 : index
    %77 = vector.load %arg8[%c0_36, %c0_37, %c0_38, %c0_39] : memref<1x1x8x8xf32, #tpu.memory_space<vmem>>, vector<1x1x8x8xf32>
    tpu.vector_store %arg8[%c0_36, %c0_37, %c0_38, %c0_39], %76 {strides = array<i32>} : memref<1x1x8x8xf32, #tpu.memory_space<vmem>>, vector<1x1x8x8xf32>,
    %c1_i32 = arith.constant 1 : i32
    %78 = arith.cmpi eq, %arg1, %c1_i32 : i32
    %79 = arith.extui %78 : i1 to i32
    %c0_i32_40 = arith.constant 0 : i32
    %80 = arith.cmpi ne, %79, %c0_i32_40 : i32
    scf.if %80 {
      %81 = arith.truncf %52 : vector<8x128xf32> to vector<8x128xbf16>
      %c0_41 = arith.constant 0 : index
      %c0_42 = arith.constant 0 : index
      %82 = vector.load %arg4[%c0_41, %c0_42] : memref<128x128xbf16, #tpu.memory_space<vmem>>, vector<128x128xbf16>
      %cst_43 = arith.constant dense<0.000000e+00> : vector<8x128xf32>
      %83 = tpu.matmul %81, %82, %cst_43 {dimension_numbers = #tpu.dot_dimension_numbers<[1], [0], [0], [1], [0, 0, 1, 1], [], []>} : vector<8x128xbf16>, vector<128x128xbf16>, vector<8x128xf32> -> vector<8x128xf32>
      %c0_44 = arith.constant 0 : index
      %c0_45 = arith.constant 0 : index
      %84 = vector.load %arg5[%c0_44, %c0_45] : memref<1x128xf32, #tpu.memory_space<vmem>>, vector<1x128xf32>
      %85 = vector.broadcast %84 : vector<1x128xf32> to vector<8x128xf32>
      %86 = arith.addf %83, %85 : vector<8x128xf32>
      %c0_46 = arith.constant 0 : index
      %c0_47 = arith.constant 0 : index
      %87 = vector.load %arg9[%c0_46, %c0_47] : memref<8x128xf32, #tpu.memory_space<vmem>>, vector<8x128xf32>
      tpu.vector_store %arg9[%c0_46, %c0_47], %86 {strides = array<i32>} : memref<8x128xf32, #tpu.memory_space<vmem>>, vector<8x128xf32>,
    } else {
    }
    return
  }
  func.func @transform_0(%arg0: i32, %arg1: i32) -> (i32, i32, i32) {
    %c0_i32 = arith.constant 0 : i32
    %c0_i32_0 = arith.constant 0 : i32
    return %arg1, %arg0, %c0_i32 : i32, i32, i32
  }
  func.func @transform_1(%arg0: i32, %arg1: i32) -> (i32, i32) {
    %c0_i32 = arith.constant 0 : i32
    %c0_i32_0 = arith.constant 0 : i32
    %c0_i32_1 = arith.constant 0 : i32
    return %c0_i32, %c0_i32_0 : i32, i32
  }
  func.func @transform_2(%arg0: i32, %arg1: i32) -> (i32, i32) {
    %c0_i32 = arith.constant 0 : i32
    %c0_i32_0 = arith.constant 0 : i32
    %c0_i32_1 = arith.constant 0 : i32
    return %c0_i32, %c0_i32_0 : i32, i32
  }
  func.func @transform_3(%arg0: i32, %arg1: i32) -> (i32, i32) {
    %c0_i32 = arith.constant 0 : i32
    %c0_i32_0 = arith.constant 0 : i32
    %c0_i32_1 = arith.constant 0 : i32
    return %c0_i32, %c0_i32_0 : i32, i32
  }
  func.func @transform_4(%arg0: i32, %arg1: i32) -> (i32, i32) {
    %c0_i32 = arith.constant 0 : i32
    %c0_i32_0 = arith.constant 0 : i32
    %c0_i32_1 = arith.constant 0 : i32
    return %c0_i32, %c0_i32_0 : i32, i32
  }
  func.func @transform_5(%arg0: i32, %arg1: i32) -> (i32, i32) {
    %c0_i32 = arith.constant 0 : i32
    %c0_i32_0 = arith.constant 0 : i32
    %c0_i32_1 = arith.constant 0 : i32
    return %c0_i32, %c0_i32_0 : i32, i32
  }
  func.func @transform_6(%arg0: i32, %arg1: i32) -> (i32, i32, i32, i32) {
    %c0_i32 = arith.constant 0 : i32
    %c0_i32_0 = arith.constant 0 : i32
    %c0_i32_1 = arith.constant 0 : i32
    return %arg0, %arg1, %c0_i32, %c0_i32_0 : i32, i32, i32, i32
  }
  func.func @transform_7(%arg0: i32, %arg1: i32) -> (i32, i32) {
    %c0_i32 = arith.constant 0 : i32
    %c0_i32_0 = arith.constant 0 : i32
    return %arg0, %c0_i32 : i32, i32
  }
}

</mosaic_0001>

<llo_original>
// kernel: rnn_sequence.1
$region0: #{rnn_sequence.1}
  #allocation0 [shape = 'u32[]', space=smem, size = 0x4, offset = 0x4, fixed_abs, tag = 'smem constant byte address 0x4 - core index']
  #allocation1 [shape = 'u32[144,128]{1,0:T(1,128)}', space=vmem, size = 0x12000, scoped, tag = 'internal scratch']
  #allocation2 [shape = 'f32[8,128]{1,0:T(8,128)}', space=vmem, size = 0x1000, scoped, tag = 'scratch operand']
  #allocation3 [shape = 'f32[1,1]{1,0:T(1,128)S(1)}', space=vmem, size = 0x200, scoped, tag = 'scoped memory for rnn_sequence.1']
  %s0 = inlined_call_operand.vmem [shape: f32[16,16,128], index: 0, kind: input, shape index: {}]
  %s1 = inlined_call_operand.vmem [shape: bf16[128,128], index: 1, kind: input, shape index: {}]
  %s2 = inlined_call_operand.vmem [shape: bf16[128,128], index: 2, kind: input, shape index: {}]
  %s3 = inlined_call_operand.vmem [shape: f32[1,128], index: 3, kind: input, shape index: {}]
  %s4 = inlined_call_operand.vmem [shape: f32[1,128], index: 4, kind: input, shape index: {}]
  %s5 = inlined_call_operand.<no memory space> [shape: f32[1,1], index: 5, kind: input, shape index: {}]
  %s6 = inlined_call_operand.vmem [shape: f32[2,2,8,8], index: 6, kind: output, shape index: {0}]
  %s7 = inlined_call_operand.hbm [shape: f32[16,128], index: 7, kind: output, shape index: {1}]
  %8 = xla_tuple %s6, %s7
  %s9 = sld [smem:[#allocation0]]
  $region111: #{rnn_sequence.1} parent=0
    _
  %s11 = ssub.s32 1, %s9
  %s12 = scalar_select 0, %s11, %s9
  %v13 = vstv %s5
  %14 = vst [vmem:[#allocation3] sm:$0x1] %v13
  $region1: #{rnn_sequence.1} parent=0
    #allocation4 [shape = 'u8[65536]{0}', space=vmem, size = 0x10000, scoped, tag = 'input window, operand 0']
    #allocation5 [shape = 'u8[8192]{0}', space=vmem, size = 0x2000, scoped, tag = 'output window, operand 1']
    #allocation6 [shape = 's32[2]{0}', space=sflag, size = 0x8, scoped, tag = 'scoped memory for rnn_sequence.1']
    %15 = vsyncpa [#allocation6], 0
    %s16 = scalar_lea.sflag [#allocation6], 1
    %17 = vsyncpa %s16, 0
    loop: start=0, step=1, limit=6
    $region2: #{rnn_sequence.1} parent=1 // loop_pre_header
      _
    $region3: #{rnn_sequence.1} parent=1 // loop_header
      %s19 = sphi 0, %s23
      %p20 = scmp.ge.s32.totalorder %s19, 6
      %s26 = sphi 0, %s38
      %s27 = sphi 0, %s34
      %s28 = sphi 0, %s26
      %s29 = sphi 0, %s27
      %s30 = sphi 0, %s28
      %s31 = sphi 0, %s29
      %s43 = sphi 0, %s45
      %s46 = sphi 0, %s43
      %s47 = sphi 0, %s46
      %s63 = sphi 0, %s47
      %s67 = sphi 0, %s67
      %s69 = sphi 0, %s67
      %s70 = sphi 0, %s69
      %s84 = sphi 0, %s70
      %s88 = sphi 0, %s88
      %s90 = sphi 0, %s88
      %s91 = sphi 0, %s90
      %s105 = sphi 0, %s91
      %s109 = sphi 0, %s109
      %s111 = sphi 0, %s109
      %s112 = sphi 0, %s111
      %s126 = sphi 0, %s112
      %s130 = sphi 0, %s130
      %s132 = sphi 0, %s130
      %s133 = sphi 0, %s132
      %s147 = sphi 0, %s133
      %s151 = sphi 0, %s151
      %s153 = sphi 0, %s151
      %s154 = sphi 0, %s153
      %s168 = sphi 0, %s154
      %s176 = sphi 0, %s178
      %s179 = sphi 0, %s176
      %s180 = sphi 0, %s179
      %s196 = sphi 0, %s180
      %s202 = sphi 0, %s204
      %s205 = sphi 0, %s202
      %s206 = sphi 0, %s205
      %s222 = sphi 0, %s206
    $region4: #{rnn_sequence.1} parent=1 // loop_header_branch
      %22 = sbr.rel (%p20) target = $region8
    $region5: #{rnn_sequence.1} parent=1 // loop_body
      %s24 = ssub.s32 %s19, 1
      %s25 = ssub.s32 %s19, 2
      %s32 = sadd.s32 1, %s27
      %p33 = scmp.ge.s32.totalorder %s32, 2
      %s34 = scalar_select %p33, 0, %s32
      %s35 = sadd.s32 1, %s26
      %s36 = scalar_select %p33, %s35, %s26
      %p37 = scmp.ge.s32.totalorder %s36, 2
      %s38 = scalar_select %p37, 0, %s36
      %s39 = ssub.s32 %s27, %s34
      %s40 = ssub.s32 %s26, %s38
      %s41 = sor.u32 %s39, %s40
      %p42 = scmp.eq.s32.totalorder %s41, 0
      %s44 = sadd.s32 %s43, 1
      %s45 = scalar_select %p42, %s43, %s44
      %p48 = pneg %p42
      %p49 = scmp.eq.s32.totalorder %s19, 3
      %p50 = por %p48, %p49
      %p51 = scmp.ne.s32.totalorder %s43, %s46
      %p52 = scmp.eq.s32.totalorder %s19, 0
      %p53 = por %p51, %p52
      %p54 = scmp.ne.s32.totalorder %s43, %s46
      %p55 = scmp.eq.s32.totalorder %s24, 3
      %p56 = por %p54, %p55
      %p57 = scmp.ne.s32.totalorder %s46, %s47
      %p58 = scmp.eq.s32.totalorder %s24, 0
      %p59 = por %p57, %p58
      %p60 = scmp.ne.s32.totalorder %s46, %s47
      %p61 = scmp.eq.s32.totalorder %s25, 3
      %p62 = por %p60, %p61
      %p64 = scmp.ne.s32.totalorder %s47, %s63
      %p65 = scmp.eq.s32.totalorder %s25, 0
      %p66 = por %p64, %p65
      %s68 = sadd.s32 %s67, 1
      %p71 = scmp.eq.s32.totalorder %s19, 3
      %p72 = scmp.ne.s32.totalorder %s67, %s69
      %p73 = scmp.eq.s32.totalorder %s19, 0
      %p74 = por %p72, %p73
      %p75 = scmp.ne.s32.totalorder %s67, %s69
      %p76 = scmp.eq.s32.totalorder %s24, 3
      %p77 = por %p75, %p76
      %p78 = scmp.ne.s32.totalorder %s69, %s70
      %p79 = scmp.eq.s32.totalorder %s24, 0
      %p80 = por %p78, %p79
      %p81 = scmp.ne.s32.totalorder %s69, %s70
      %p82 = scmp.eq.s32.totalorder %s25, 3
      %p83 = por %p81, %p82
      %p85 = scmp.ne.s32.totalorder %s70, %s84
      %p86 = scmp.eq.s32.totalorder %s25, 0
      %p87 = por %p85, %p86
      %s89 = sadd.s32 %s88, 1
      %p92 = scmp.eq.s32.totalorder %s19, 3
      %p93 = scmp.ne.s32.totalorder %s88, %s90
      %p94 = scmp.eq.s32.totalorder %s19, 0
      %p95 = por %p93, %p94
      %p96 = scmp.ne.s32.totalorder %s88, %s90
      %p97 = scmp.eq.s32.totalorder %s24, 3
      %p98 = por %p96, %p97
      %p99 = scmp.ne.s32.totalorder %s90, %s91
      %p100 = scmp.eq.s32.totalorder %s24, 0
      %p101 = por %p99, %p100
      %p102 = scmp.ne.s32.totalorder %s90, %s91
      %p103 = scmp.eq.s32.totalorder %s25, 3
      %p104 = por %p102, %p103
      %p106 = scmp.ne.s32.totalorder %s91, %s105
      %p107 = scmp.eq.s32.totalorder %s25, 0
      %p108 = por %p106, %p107
      %s110 = sadd.s32 %s109, 1
      %p113 = scmp.eq.s32.totalorder %s19, 3
      %p114 = scmp.ne.s32.totalorder %s109, %s111
      %p115 = scmp.eq.s32.totalorder %s19, 0
      %p116 = por %p114, %p115
      %p117 = scmp.ne.s32.totalorder %s109, %s111
      %p118 = scmp.eq.s32.totalorder %s24, 3
      %p119 = por %p117, %p118
      %p120 = scmp.ne.s32.totalorder %s111, %s112
      %p121 = scmp.eq.s32.totalorder %s24, 0
      %p122 = por %p120, %p121
      %p123 = scmp.ne.s32.totalorder %s111, %s112
      %p124 = scmp.eq.s32.totalorder %s25, 3
      %p125 = por %p123, %p124
      %p127 = scmp.ne.s32.totalorder %s112, %s126
      %p128 = scmp.eq.s32.totalorder %s25, 0
      %p129 = por %p127, %p128
      %s131 = sadd.s32 %s130, 1
      %p134 = scmp.eq.s32.totalorder %s19, 3
      %p135 = scmp.ne.s32.totalorder %s130, %s132
      %p136 = scmp.eq.s32.totalorder %s19, 0
      %p137 = por %p135, %p136
      %p138 = scmp.ne.s32.totalorder %s130, %s132
      %p139 = scmp.eq.s32.totalorder %s24, 3
      %p140 = por %p138, %p139
      %p141 = scmp.ne.s32.totalorder %s132, %s133
      %p142 = scmp.eq.s32.totalorder %s24, 0
      %p143 = por %p141, %p142
      %p144 = scmp.ne.s32.totalorder %s132, %s133
      %p145 = scmp.eq.s32.totalorder %s25, 3
      %p146 = por %p144, %p145
      %p148 = scmp.ne.s32.totalorder %s133, %s147
      %p149 = scmp.eq.s32.totalorder %s25, 0
      %p150 = por %p148, %p149
      %s152 = sadd.s32 %s151, 1
      %p155 = scmp.eq.s32.totalorder %s19, 3
      %p156 = scmp.ne.s32.totalorder %s151, %s153
      %p157 = scmp.eq.s32.totalorder %s19, 0
      %p158 = por %p156, %p157
      %p159 = scmp.ne.s32.totalorder %s151, %s153
      %p160 = scmp.eq.s32.totalorder %s24, 3
      %p161 = por %p159, %p160
      %p162 = scmp.ne.s32.totalorder %s153, %s154
      %p163 = scmp.eq.s32.totalorder %s24, 0
      %p164 = por %p162, %p163
      %p165 = scmp.ne.s32.totalorder %s153, %s154
      %p166 = scmp.eq.s32.totalorder %s25, 3
      %p167 = por %p165, %p166
      %p169 = scmp.ne.s32.totalorder %s154, %s168
      %p170 = scmp.eq.s32.totalorder %s25, 0
      %p171 = por %p169, %p170
      %s172 = ssub.s32 %s26, %s38
      %s173 = ssub.s32 %s27, %s34
      %s174 = sor.u32 %s172, %s173
      %p175 = scmp.eq.s32.totalorder %s174, 0
      %s177 = sadd.s32 %s176, 1
      %s178 = scalar_select %p175, %s176, %s177
      %p181 = pneg %p175
      %p182 = scmp.eq.s32.totalorder %s19, 3
      %p183 = por %p181, %p182
      %p184 = scmp.ne.s32.totalorder %s176, %s179
      %p185 = scmp.eq.s32.totalorder %s19, 0
      %p186 = por %p184, %p185
      %p187 = scmp.ne.s32.totalorder %s176, %s179
      %p188 = scmp.eq.s32.totalorder %s24, 3
      %p189 = por %p187, %p188
      %p190 = scmp.ne.s32.totalorder %s179, %s180
      %p191 = scmp.eq.s32.totalorder %s24, 0
      %p192 = por %p190, %p191
      %p193 = scmp.ne.s32.totalorder %s179, %s180
      %p194 = scmp.eq.s32.totalorder %s25, 3
      %p195 = por %p193, %p194
      %p197 = scmp.ne.s32.totalorder %s180, %s196
      %p198 = scmp.eq.s32.totalorder %s25, 0
      %p199 = por %p197, %p198
      %s200 = ssub.s32 %s26, %s38
      %p201 = scmp.eq.s32.totalorder %s200, 0
      %s203 = sadd.s32 %s202, 1
      %s204 = scalar_select %p201, %s202, %s203
      %p207 = pneg %p201
      %p208 = scmp.eq.s32.totalorder %s19, 3
      %p209 = por %p207, %p208
      %p210 = scmp.ne.s32.totalorder %s202, %s205
      %p211 = scmp.eq.s32.totalorder %s19, 0
      %p212 = por %p210, %p211
      %p213 = scmp.ne.s32.totalorder %s202, %s205
      %p214 = scmp.eq.s32.totalorder %s24, 3
      %p215 = por %p213, %p214
      %p216 = scmp.ne.s32.totalorder %s205, %s206
      %p217 = scmp.eq.s32.totalorder %s24, 0
      %p218 = por %p216, %p217
      %p219 = scmp.ne.s32.totalorder %s205, %s206
      %p220 = scmp.eq.s32.totalorder %s25, 3
      %p221 = por %p219, %p220
      %p223 = scmp.ne.s32.totalorder %s206, %s222
      %p224 = scmp.eq.s32.totalorder %s25, 0
      %p225 = por %p223, %p224
      %p226 = scmp.le.s32.totalorder 1, %s19
      %p227 = scmp.lt.s32.totalorder %s19, 5
      %p228 = pnand %p226, %p227
      %p229 = pneg %p228
      // Predicated region
      $region9: #{rnn_sequence.1} parent=5 // pred_check
        _
      $region10: #{rnn_sequence.1} parent=5 // pred_check_branch
        %231 = sbr.rel (%p228) target = $region12
      $region11: #{rnn_sequence.1} parent=5 // pred_region
        %s232 = ssub.s32 %s19, 1
        // Predicated region
        $region13: #{rnn_sequence.1} parent=11 // pred_check
          %p233 = pneg %p80
        $region14: #{rnn_sequence.1} parent=11 // pred_check_branch
          %235 = sbr.rel (%p233) target = $region16
        $region15: #{rnn_sequence.1} parent=11 // pred_region
          _
        $region16: #{rnn_sequence.1} parent=11 // pred_fallthru
          _
        // Predicated region
        $region17: #{rnn_sequence.1} parent=11 // pred_check
          %p236 = pneg %p101
        $region18: #{rnn_sequence.1} parent=11 // pred_check_branch
          %238 = sbr.rel (%p236) target = $region20
        $region19: #{rnn_sequence.1} parent=11 // pred_region
          _
        $region20: #{rnn_sequence.1} parent=11 // pred_fallthru
          _
        // Predicated region
        $region21: #{rnn_sequence.1} parent=11 // pred_check
          %p239 = pneg %p122
        $region22: #{rnn_sequence.1} parent=11 // pred_check_branch
          %241 = sbr.rel (%p239) target = $region24
        $region23: #{rnn_sequence.1} parent=11 // pred_region
          _
        $region24: #{rnn_sequence.1} parent=11 // pred_fallthru
          _
        // Predicated region
        $region25: #{rnn_sequence.1} parent=11 // pred_check
          %p242 = pneg %p143
        $region26: #{rnn_sequence.1} parent=11 // pred_check_branch
          %244 = sbr.rel (%p242) target = $region28
        $region27: #{rnn_sequence.1} parent=11 // pred_region
          _
        $region28: #{rnn_sequence.1} parent=11 // pred_fallthru
          _
        // Predicated region
        $region29: #{rnn_sequence.1} parent=11 // pred_check
          %p245 = pneg %p164
        $region30: #{rnn_sequence.1} parent=11 // pred_check_branch
          %247 = sbr.rel (%p245) target = $region32
        $region31: #{rnn_sequence.1} parent=11 // pred_region
          _
        $region32: #{rnn_sequence.1} parent=11 // pred_fallthru
          _
      $region12: #{rnn_sequence.1} parent=5 // pred_fallthru
        _
      %p248 = scmp.lt.s32.totalorder %s19, 4
      // Predicated region
      $region33: #{rnn_sequence.1} parent=5 // pred_check
        %p249 = pneg %p248
      $region34: #{rnn_sequence.1} parent=5 // pred_check_branch
        %251 = sbr.rel (%p249) target = $region36
      $region35: #{rnn_sequence.1} parent=5 // pred_region
        // Predicated region
        $region37: #{rnn_sequence.1} parent=35 // pred_check
          %p252 = pneg %p53
        $region38: #{rnn_sequence.1} parent=35 // pred_check_branch
          %254 = sbr.rel (%p252) target = $region40
        $region39: #{rnn_sequence.1} parent=35 // pred_region
          %s255 = sand.u32 %s43, 1
          %s256 = sand.u32 %s43, 1
          %s257 = smul.addr %s256, 64
          %s258 = scalar_lea.vmem [#allocation4], %s257
          %s259 = smul.u32 8, %s27
          %s260 = smul.addr %s259, 2
          %s261 = sadd.s32 %s26, %s260
          %s262 = smul.addr %s261, 8
          %s263 = scalar_lea.vmem %s0, %s262
          // Predicated region
          $region41: #{rnn_sequence.1} parent=39 // pred_check
            _
          $region42: #{rnn_sequence.1} parent=39 // pred_check_branch
            %265 = sbr.rel (0) target = $region44
          $region43: #{rnn_sequence.1} parent=39 // pred_region
            // Predicated region
            $region45: #{rnn_sequence.1} parent=43 // pred_check
              _
            $region46: #{rnn_sequence.1} parent=43 // pred_check_branch
              %267 = sbr.rel (0) target = $region48
            $region47: #{rnn_sequence.1} parent=43 // pred_region
              // Predicated region
              $region60: #{rnn_sequence.1} parent=47 // pred_check
                _
              $region61: #{rnn_sequence.1} parent=47 // pred_check_branch
                %297 = sbr.rel (0) target = $region63
              $region62: #{rnn_sequence.1} parent=47 // pred_region
                loop: start=0, step=1, limit=1
                $region64: #{rnn_sequence.1} parent=62 // loop_pre_header
                  _
                $region65: #{rnn_sequence.1} parent=62 // loop_header
                  %s299 = sphi 0, %s303
                  %p300 = scmp.ge.s32.totalorder %s299, 1
                  %s304 = sphi %s263, %s263
                  %s305 = sphi %s258, %s258
                $region66: #{rnn_sequence.1} parent=62 // loop_header_branch
                  %302 = sbr.rel (%p300) target = $region70
                $region67: #{rnn_sequence.1} parent=62 // loop_body
                  %v306 = vld [vmem:[%s304] sm:$0xff]
                  %307 = vst [vmem:[%s305] sm:$0xff] %v306
                  %v308 = vld [vmem:[%s304 + $0x10] sm:$0xff]
                  %309 = vst [vmem:[%s305 + $0x8] sm:$0xff] %v308
                  %v310 = vld [vmem:[%s304 + $0x20] sm:$0xff]
                  %311 = vst [vmem:[%s305 + $0x10] sm:$0xff] %v310
                  %v312 = vld [vmem:[%s304 + $0x30] sm:$0xff]
                  %313 = vst [vmem:[%s305 + $0x18] sm:$0xff] %v312
                  %v314 = vld [vmem:[%s304 + $0x40] sm:$0xff]
                  %315 = vst [vmem:[%s305 + $0x20] sm:$0xff] %v314
                  %v316 = vld [vmem:[%s304 + $0x50] sm:$0xff]
                  %317 = vst [vmem:[%s305 + $0x28] sm:$0xff] %v316
                  %v318 = vld [vmem:[%s304 + $0x60] sm:$0xff]
                  %319 = vst [vmem:[%s305 + $0x30] sm:$0xff] %v318
                  %v320 = vld [vmem:[%s304 + $0x70] sm:$0xff]
                  %321 = vst [vmem:[%s305 + $0x38] sm:$0xff] %v320
                $region68: #{rnn_sequence.1} parent=62 // loop_footer
                  %s303 = sadd.s32 1, %s299
                $region69: #{rnn_sequence.1} parent=62 // loop_footer_branch
                  %298 = sbr.rel target = $region65
                $region70: #{rnn_sequence.1} parent=62 // loop_exit
                  _
              $region63: #{rnn_sequence.1} parent=47 // pred_fallthru
                _
              // Predicated region
              $region71: #{rnn_sequence.1} parent=47 // pred_check
                _
              $region72: #{rnn_sequence.1} parent=47 // pred_check_branch
                %323 = sbr.rel target = $region74
              $region73: #{rnn_sequence.1} parent=47 // pred_region
                _
              $region74: #{rnn_sequence.1} parent=47 // pred_fallthru
                _
            $region48: #{rnn_sequence.1} parent=43 // pred_fallthru
              _
            // Predicated region
            $region49: #{rnn_sequence.1} parent=43 // pred_check
              _
            $region50: #{rnn_sequence.1} parent=43 // pred_check_branch
              %269 = sbr.rel target = $region52
            $region51: #{rnn_sequence.1} parent=43 // pred_region
              %s271 = ssub.s32 256, 1
              loop: start=0, step=1, limit=1
              $region53: #{rnn_sequence.1} parent=51 // loop_pre_header
                _
              $region54: #{rnn_sequence.1} parent=51 // loop_header
                %s273 = sphi 0, %s277
                %p274 = scmp.ge.s32.totalorder %s273, 1
                %s278 = sphi %s263, %s263
                %s279 = sphi %s258, %s258
              $region55: #{rnn_sequence.1} parent=51 // loop_header_branch
                %276 = sbr.rel (%p274) target = $region59
              $region56: #{rnn_sequence.1} parent=51 // loop_body
                %v280 = vld [vmem:[%s278] sm:%s271]
                %281 = vst [vmem:[%s279] sm:%s271] %v280
                %v282 = vld [vmem:[%s278 + $0x10] sm:%s271]
                %283 = vst [vmem:[%s279 + $0x8] sm:%s271] %v282
                %v284 = vld [vmem:[%s278 + $0x20] sm:%s271]
                %285 = vst [vmem:[%s279 + $0x10] sm:%s271] %v284
                %v286 = vld [vmem:[%s278 + $0x30] sm:%s271]
                %287 = vst [vmem:[%s279 + $0x18] sm:%s271] %v286
                %v288 = vld [vmem:[%s278 + $0x40] sm:%s271]
                %289 = vst [vmem:[%s279 + $0x20] sm:%s271] %v288
                %v290 = vld [vmem:[%s278 + $0x50] sm:%s271]
                %291 = vst [vmem:[%s279 + $0x28] sm:%s271] %v290
                %v292 = vld [vmem:[%s278 + $0x60] sm:%s271]
                %293 = vst [vmem:[%s279 + $0x30] sm:%s271] %v292
                %v294 = vld [vmem:[%s278 + $0x70] sm:%s271]
                %295 = vst [vmem:[%s279 + $0x38] sm:%s271] %v294
              $region57: #{rnn_sequence.1} parent=51 // loop_footer
                %s277 = sadd.s32 1, %s273
              $region58: #{rnn_sequence.1} parent=51 // loop_footer_branch
                %272 = sbr.rel target = $region54
              $region59: #{rnn_sequence.1} parent=51 // loop_exit
                _
            $region52: #{rnn_sequence.1} parent=43 // pred_fallthru
              _
          $region44: #{rnn_sequence.1} parent=39 // pred_fallthru
            _
          %324 = vnop
        $region40: #{rnn_sequence.1} parent=35 // pred_fallthru
          _
      $region36: #{rnn_sequence.1} parent=5 // pred_fallthru
        _
      %p325 = scmp.le.s32.totalorder 1, %s19
      %p326 = scmp.lt.s32.totalorder %s19, 5
      %p327 = pnand %p325, %p326
      %p328 = pneg %p327
      // Predicated region
      $region75: #{rnn_sequence.1} parent=5 // pred_check
        _
      $region76: #{rnn_sequence.1} parent=5 // pred_check_branch
        %330 = sbr.rel (%p327) target = $region78
      $region77: #{rnn_sequence.1} parent=5 // pred_region
        %s331 = ssub.s32 %s19, 1
        %s332 = sand.u32 %s46, 1
        %s333 = sand.u32 %s46, 1
        %s334 = smul.addr %s333, 64
        %s335 = scalar_lea.vmem [#allocation4], %s334
        // Predicated region
        $region79: #{rnn_sequence.1} parent=77 // pred_check
          %p336 = pneg %p59
        $region80: #{rnn_sequence.1} parent=77 // pred_check_branch
          %338 = sbr.rel (%p336) target = $region82
        $region81: #{rnn_sequence.1} parent=77 // pred_region
          _
        $region82: #{rnn_sequence.1} parent=77 // pred_fallthru
          _
        %s339 = sand.u32 %s46, 1
        %s340 = sand.u32 %s46, 1
        %s341 = smul.addr %s340, 64
        %s342 = scalar_lea.vmem [#allocation4], %s341
        %p343 = pneg %p59
        %p344 = pneg %p56
        %p345 = pneg %p80
        %p346 = pneg %p77
        %p347 = pneg %p101
        %p348 = pneg %p98
        %p349 = pneg %p122
        %p350 = pneg %p119
        %p351 = pneg %p143
        %p352 = pneg %p140
        %p353 = pneg %p164
        %p354 = pneg %p161
        %p355 = pneg %p192
        %p356 = pneg %p189
        %p357 = scmp.lt.s32.totalorder %s28, 1
        %s358 = scalar_select %p357, %s28, 1
        %p359 = scmp.lt.s32.totalorder %s29, 1
        %s360 = scalar_select %p359, %s29, 1
        %s361 = smul.addr %s358, 2
        %s362 = sadd.s32 %s360, %s361
        %s363 = smul.addr %s362, 8
        %s364 = scalar_lea.vmem %s6, %s363
        %p365 = pneg %p218
        %p366 = pneg %p215
        %s367 = sand.u32 %s205, 1
        %s368 = scalar_lea.sflag [#allocation6], %s367
        %s369 = sand.u32 %s205, 1
        %s370 = smul.addr %s369, 8
        %s371 = scalar_lea.vmem [#allocation5], %s370
        %s372 = smul.u32 8, %s29
        %p373 = scmp.lt.s32.totalorder %s28, 1
        %s374 = scalar_select %p373, %s28, 1
        %p375 = scmp.lt.s32.totalorder %s29, 1
        %s376 = scalar_select %p375, %s29, 1
        %s377 = smul.addr %s374, 2
        %s378 = sadd.s32 %s376, %s377
        %s379 = smul.addr %s378, 8
        %s380 = scalar_lea.vmem %s6, %s379
        %p382 = scmp.eq.s32.totalorder %s29, 0
        // Predicated region
        $region83: #{rnn_sequence.1} parent=77 // pred_check
          %p383 = pneg %p382
        $region84: #{rnn_sequence.1} parent=77 // pred_check_branch
          %385 = sbr.rel (%p383) target = $region86
        $region85: #{rnn_sequence.1} parent=77 // pred_region
          %386 = vst [vmem:[#allocation2] sm:$0xff] 0.0
        $region86: #{rnn_sequence.1} parent=77 // pred_fallthru
          _
        %v387 = vld [vmem:[%s1] sm:$0xf]
        %v388 = vld [vmem:[%s1 + $0x4] sm:$0xf]
        %v389 = vld [vmem:[%s1 + $0x8] sm:$0xf]
        %v390 = vld [vmem:[%s1 + $0xc] sm:$0xf]
        %v391 = vld [vmem:[%s1 + $0x10] sm:$0xf]
        %v392 = vld [vmem:[%s1 + $0x14] sm:$0xf]
        %v393 = vld [vmem:[%s1 + $0x18] sm:$0xf]
        %v394 = vld [vmem:[%s1 + $0x1c] sm:$0xf]
        %v395 = vld [vmem:[%s1 + $0x20] sm:$0xf]
        %v396 = vld [vmem:[%s1 + $0x24] sm:$0xf]
        %v397 = vld [vmem:[%s1 + $0x28] sm:$0xf]
        %v398 = vld [vmem:[%s1 + $0x2c] sm:$0xf]
        %v399 = vld [vmem:[%s1 + $0x30] sm:$0xf]
        %v400 = vld [vmem:[%s1 + $0x34] sm:$0xf]
        %v401 = vld [vmem:[%s1 + $0x38] sm:$0xf]
        %v402 = vld [vmem:[%s1 + $0x3c] sm:$0xf]
        %v403 = vld [vmem:[#allocation2] sm:$0xff]
        %v404 = vld [vmem:[%s335] sm:$0xff]
        %v405 = vpack.c.bf16 %v403, %v403
        %v422 = vunpack.c.l.b16 %v387
        %v423 = vunpack.c.l.b16 %v388
        %v424 = vunpack.c.l.b16 %v389
        %v425 = vunpack.c.l.b16 %v390
        %v426 = vunpack.c.l.b16 %v391
        %v427 = vunpack.c.l.b16 %v392
        %v428 = vunpack.c.l.b16 %v393
        %v429 = vunpack.c.l.b16 %v394
        %v430 = vunpack.c.l.b16 %v395
        %v431 = vunpack.c.l.b16 %v396
        %v432 = vunpack.c.l.b16 %v397
        %v433 = vunpack.c.l.b16 %v398
        %v434 = vunpack.c.l.b16 %v399
        %v435 = vunpack.c.l.b16 %v400
        %v436 = vunpack.c.l.b16 %v401
        %v437 = vunpack.c.l.b16 %v402
        %v438 = vpack.c.b16 %v423, %v422
        %v439 = vpack.c.b16 %v425, %v424
        %v440 = vpack.c.b16 %v427, %v426
        %v441 = vpack.c.b16 %v429, %v428
        %v442 = vpack.c.b16 %v431, %v430
        %v443 = vpack.c.b16 %v433, %v432
        %v444 = vpack.c.b16 %v435, %v434
        %v445 = vpack.c.b16 %v437, %v436
        %454 = vmatprep.subr.bf16.mxu0 0
        %455 = vmatpush1.bf16.msra.mxu0 %v445
        %456 = vmatprep.subr.bf16.mxu0 0
        %457 = vmatpush1.bf16.msra.mxu0 %v444
        %458 = vmatprep.subr.bf16.mxu0 0
        %459 = vmatpush1.bf16.msra.mxu0 %v443
        %460 = vmatprep.subr.bf16.mxu0 0
        %461 = vmatpush1.bf16.msra.mxu0 %v442
        %462 = vmatprep.subr.bf16.mxu0 0
        %463 = vmatpush1.bf16.msra.mxu0 %v441
        %464 = vmatprep.subr.bf16.mxu0 0
        %465 = vmatpush1.bf16.msra.mxu0 %v440
        %466 = vmatprep.subr.bf16.mxu0 0
        %467 = vmatpush1.bf16.msra.mxu0 %v439
        %468 = vmatprep.subr.bf16.mxu0 0
        %469 = vmatpush1.bf16.msra.mxu0 %v438
        %470 = vmatprep.subr.bf16.mxu0 0
        %471 = vmatpush2.bf16.msra.mxu0 0
        %472 = vmatprep.subr.bf16.mxu0 0
        %473 = vmatpush2.bf16.msra.mxu0 0
        %474 = vmatprep.subr.bf16.mxu0 0
        %475 = vmatpush2.bf16.msra.mxu0 0
        %476 = vmatprep.subr.bf16.mxu0 0
        %477 = vmatpush2.bf16.msra.mxu0 0
        %478 = vmatprep.subr.bf16.mxu0 0
        %479 = vmatpush2.bf16.msra.mxu0 0
        %480 = vmatprep.subr.bf16.mxu0 0
        %481 = vmatpush2.bf16.msra.mxu0 0
        %482 = vmatprep.subr.bf16.mxu0 0
        %483 = vmatpush2.bf16.msra.mxu0 0
        %484 = vmatprep.subr.bf16.mxu0 0
        %485 = vmatpush2.bf16.msra.mxu0 0
        %486 = vmatprep.mubr.bf16.mxu0 0
        %487 = vmatmul.mubr.bf16.gmra.mxu0 %v405
        %v488 = vpop.f32.mrf.mxu0
        %v489 = vadd.f32 0.0, %v488
        %v490 = vpop.f32.mrf.mxu0
        %v491 = vpop.f32.mrf.mxu0
        %v492 = vpop.f32.mrf.mxu0
        %493 = vdwg.mxu0
        %v494 = vadd.f32 %v404, %v489
        %v495 = vtanh.pop %v494
        %s496 = scalar_lea.vmem %s335, 8 [#allocation4]
        %v497 = vld [vmem:[%s496] sm:$0xff]
        %v498 = vpack.c.bf16 %v495, %v495
        %499 = vmatprep.subr.bf16.mxu0 0
        %500 = vmatpush1.bf16.msra.mxu0 %v445
        %501 = vmatprep.subr.bf16.mxu0 0
        %502 = vmatpush1.bf16.msra.mxu0 %v444
        %503 = vmatprep.subr.bf16.mxu0 0
        %504 = vmatpush1.bf16.msra.mxu0 %v443
        %505 = vmatprep.subr.bf16.mxu0 0
        %506 = vmatpush1.bf16.msra.mxu0 %v442
        %507 = vmatprep.subr.bf16.mxu0 0
        %508 = vmatpush1.bf16.msra.mxu0 %v441
        %509 = vmatprep.subr.bf16.mxu0 0
        %510 = vmatpush1.bf16.msra.mxu0 %v440
        %511 = vmatprep.subr.bf16.mxu0 0
        %512 = vmatpush1.bf16.msra.mxu0 %v439
        %513 = vmatprep.subr.bf16.mxu0 0
        %514 = vmatpush1.bf16.msra.mxu0 %v438
        %515 = vmatprep.subr.bf16.mxu0 0
        %516 = vmatpush2.bf16.msra.mxu0 0
        %517 = vmatprep.subr.bf16.mxu0 0
        %518 = vmatpush2.bf16.msra.mxu0 0
        %519 = vmatprep.subr.bf16.mxu0 0
        %520 = vmatpush2.bf16.msra.mxu0 0
        %521 = vmatprep.subr.bf16.mxu0 0
        %522 = vmatpush2.bf16.msra.mxu0 0
        %523 = vmatprep.subr.bf16.mxu0 0
        %524 = vmatpush2.bf16.msra.mxu0 0
        %525 = vmatprep.subr.bf16.mxu0 0
        %526 = vmatpush2.bf16.msra.mxu0 0
        %527 = vmatprep.subr.bf16.mxu0 0
        %528 = vmatpush2.bf16.msra.mxu0 0
        %529 = vmatprep.subr.bf16.mxu0 0
        %530 = vmatpush2.bf16.msra.mxu0 0
        %531 = vmatprep.mubr.bf16.mxu0 0
        %532 = vmatmul.mubr.bf16.gmra.mxu0 %v498
        %v533 = vpop.f32.mrf.mxu0
        %v534 = vadd.f32 0.0, %v533
        %v535 = vpop.f32.mrf.mxu0
        %v536 = vpop.f32.mrf.mxu0
        %v537 = vpop.f32.mrf.mxu0
        %538 = vdwg.mxu0
        %v539 = vadd.f32 %v497, %v534
        %v540 = vtanh.pop %v539
        %s541 = scalar_lea.vmem %s335, 16 [#allocation4]
        %v542 = vld [vmem:[%s541] sm:$0xff]
        %v543 = vpack.c.bf16 %v540, %v540
        %544 = vmatprep.subr.bf16.mxu0 0
        %545 = vmatpush1.bf16.msra.mxu0 %v445
        %546 = vmatprep.subr.bf16.mxu0 0
        %547 = vmatpush1.bf16.msra.mxu0 %v444
        %548 = vmatprep.subr.bf16.mxu0 0
        %549 = vmatpush1.bf16.msra.mxu0 %v443
        %550 = vmatprep.subr.bf16.mxu0 0
        %551 = vmatpush1.bf16.msra.mxu0 %v442
        %552 = vmatprep.subr.bf16.mxu0 0
        %553 = vmatpush1.bf16.msra.mxu0 %v441
        %554 = vmatprep.subr.bf16.mxu0 0
        %555 = vmatpush1.bf16.msra.mxu0 %v440
        %556 = vmatprep.subr.bf16.mxu0 0
        %557 = vmatpush1.bf16.msra.mxu0 %v439
        %558 = vmatprep.subr.bf16.mxu0 0
        %559 = vmatpush1.bf16.msra.mxu0 %v438
        %560 = vmatprep.subr.bf16.mxu0 0
        %561 = vmatpush2.bf16.msra.mxu0 0
        %562 = vmatprep.subr.bf16.mxu0 0
        %563 = vmatpush2.bf16.msra.mxu0 0
        %564 = vmatprep.subr.bf16.mxu0 0
        %565 = vmatpush2.bf16.msra.mxu0 0
        %566 = vmatprep.subr.bf16.mxu0 0
        %567 = vmatpush2.bf16.msra.mxu0 0
        %568 = vmatprep.subr.bf16.mxu0 0
        %569 = vmatpush2.bf16.msra.mxu0 0
        %570 = vmatprep.subr.bf16.mxu0 0
        %571 = vmatpush2.bf16.msra.mxu0 0
        %572 = vmatprep.subr.bf16.mxu0 0
        %573 = vmatpush2.bf16.msra.mxu0 0
        %574 = vmatprep.subr.bf16.mxu0 0
        %575 = vmatpush2.bf16.msra.mxu0 0
        %576 = vmatprep.mubr.bf16.mxu0 0
        %577 = vmatmul.mubr.bf16.gmra.mxu0 %v543
        %v578 = vpop.f32.mrf.mxu0
        %v579 = vadd.f32 0.0, %v578
        %v580 = vpop.f32.mrf.mxu0
        %v581 = vpop.f32.mrf.mxu0
        %v582 = vpop.f32.mrf.mxu0
        %583 = vdwg.mxu0
        %v584 = vadd.f32 %v542, %v579
        %v585 = vtanh.pop %v584
        %s586 = scalar_lea.vmem %s335, 24 [#allocation4]
        %v587 = vld [vmem:[%s586] sm:$0xff]
        %v588 = vpack.c.bf16 %v585, %v585
        %589 = vmatprep.subr.bf16.mxu0 0
        %590 = vmatpush1.bf16.msra.mxu0 %v445
        %591 = vmatprep.subr.bf16.mxu0 0
        %592 = vmatpush1.bf16.msra.mxu0 %v444
        %593 = vmatprep.subr.bf16.mxu0 0
        %594 = vmatpush1.bf16.msra.mxu0 %v443
        %595 = vmatprep.subr.bf16.mxu0 0
        %596 = vmatpush1.bf16.msra.mxu0 %v442
        %597 = vmatprep.subr.bf16.mxu0 0
        %598 = vmatpush1.bf16.msra.mxu0 %v441
        %599 = vmatprep.subr.bf16.mxu0 0
        %600 = vmatpush1.bf16.msra.mxu0 %v440
        %601 = vmatprep.subr.bf16.mxu0 0
        %602 = vmatpush1.bf16.msra.mxu0 %v439
        %603 = vmatprep.subr.bf16.mxu0 0
        %604 = vmatpush1.bf16.msra.mxu0 %v438
        %605 = vmatprep.subr.bf16.mxu0 0
        %606 = vmatpush2.bf16.msra.mxu0 0
        %607 = vmatprep.subr.bf16.mxu0 0
        %608 = vmatpush2.bf16.msra.mxu0 0
        %609 = vmatprep.subr.bf16.mxu0 0
        %610 = vmatpush2.bf16.msra.mxu0 0
        %611 = vmatprep.subr.bf16.mxu0 0
        %612 = vmatpush2.bf16.msra.mxu0 0
        %613 = vmatprep.subr.bf16.mxu0 0
        %614 = vmatpush2.bf16.msra.mxu0 0
        %615 = vmatprep.subr.bf16.mxu0 0
        %616 = vmatpush2.bf16.msra.mxu0 0
        %617 = vmatprep.subr.bf16.mxu0 0
        %618 = vmatpush2.bf16.msra.mxu0 0
        %619 = vmatprep.subr.bf16.mxu0 0
        %620 = vmatpush2.bf16.msra.mxu0 0
        %621 = vmatprep.mubr.bf16.mxu0 0
        %622 = vmatmul.mubr.bf16.gmra.mxu0 %v588
        %v623 = vpop.f32.mrf.mxu0
        %v624 = vadd.f32 0.0, %v623
        %v625 = vpop.f32.mrf.mxu0
        %v626 = vpop.f32.mrf.mxu0
        %v627 = vpop.f32.mrf.mxu0
        %628 = vdwg.mxu0
        %v629 = vadd.f32 %v587, %v624
        %v630 = vtanh.pop %v629
        %s631 = scalar_lea.vmem %s335, 32 [#allocation4]
        %v632 = vld [vmem:[%s631] sm:$0xff]
        %v633 = vpack.c.bf16 %v630, %v630
        %634 = vmatprep.subr.bf16.mxu0 0
        %635 = vmatpush1.bf16.msra.mxu0 %v445
        %636 = vmatprep.subr.bf16.mxu0 0
        %637 = vmatpush1.bf16.msra.mxu0 %v444
        %638 = vmatprep.subr.bf16.mxu0 0
        %639 = vmatpush1.bf16.msra.mxu0 %v443
        %640 = vmatprep.subr.bf16.mxu0 0
        %641 = vmatpush1.bf16.msra.mxu0 %v442
        %642 = vmatprep.subr.bf16.mxu0 0
        %643 = vmatpush1.bf16.msra.mxu0 %v441
        %644 = vmatprep.subr.bf16.mxu0 0
        %645 = vmatpush1.bf16.msra.mxu0 %v440
        %646 = vmatprep.subr.bf16.mxu0 0
        %647 = vmatpush1.bf16.msra.mxu0 %v439
        %648 = vmatprep.subr.bf16.mxu0 0
        %649 = vmatpush1.bf16.msra.mxu0 %v438
        %650 = vmatprep.subr.bf16.mxu0 0
        %651 = vmatpush2.bf16.msra.mxu0 0
        %652 = vmatprep.subr.bf16.mxu0 0
        %653 = vmatpush2.bf16.msra.mxu0 0
        %654 = vmatprep.subr.bf16.mxu0 0
        %655 = vmatpush2.bf16.msra.mxu0 0
        %656 = vmatprep.subr.bf16.mxu0 0
        %657 = vmatpush2.bf16.msra.mxu0 0
        %658 = vmatprep.subr.bf16.mxu0 0
        %659 = vmatpush2.bf16.msra.mxu0 0
        %660 = vmatprep.subr.bf16.mxu0 0
        %661 = vmatpush2.bf16.msra.mxu0 0
        %662 = vmatprep.subr.bf16.mxu0 0
        %663 = vmatpush2.bf16.msra.mxu0 0
        %664 = vmatprep.subr.bf16.mxu0 0
        %665 = vmatpush2.bf16.msra.mxu0 0
        %666 = vmatprep.mubr.bf16.mxu0 0
        %667 = vmatmul.mubr.bf16.gmra.mxu0 %v633
        %v668 = vpop.f32.mrf.mxu0
        %v669 = vadd.f32 0.0, %v668
        %v670 = vpop.f32.mrf.mxu0
        %v671 = vpop.f32.mrf.mxu0
        %v672 = vpop.f32.mrf.mxu0
        %673 = vdwg.mxu0
        %v674 = vadd.f32 %v632, %v669
        %v675 = vtanh.pop %v674
        %s676 = scalar_lea.vmem %s335, 40 [#allocation4]
        %v677 = vld [vmem:[%s676] sm:$0xff]
        %v678 = vpack.c.bf16 %v675, %v675
        %679 = vmatprep.subr.bf16.mxu0 0
        %680 = vmatpush1.bf16.msra.mxu0 %v445
        %681 = vmatprep.subr.bf16.mxu0 0
        %682 = vmatpush1.bf16.msra.mxu0 %v444
        %683 = vmatprep.subr.bf16.mxu0 0
        %684 = vmatpush1.bf16.msra.mxu0 %v443
        %685 = vmatprep.subr.bf16.mxu0 0
        %686 = vmatpush1.bf16.msra.mxu0 %v442
        %687 = vmatprep.subr.bf16.mxu0 0
        %688 = vmatpush1.bf16.msra.mxu0 %v441
        %689 = vmatprep.subr.bf16.mxu0 0
        %690 = vmatpush1.bf16.msra.mxu0 %v440
        %691 = vmatprep.subr.bf16.mxu0 0
        %692 = vmatpush1.bf16.msra.mxu0 %v439
        %693 = vmatprep.subr.bf16.mxu0 0
        %694 = vmatpush1.bf16.msra.mxu0 %v438
        %695 = vmatprep.subr.bf16.mxu0 0
        %696 = vmatpush2.bf16.msra.mxu0 0
        %697 = vmatprep.subr.bf16.mxu0 0
        %698 = vmatpush2.bf16.msra.mxu0 0
        %699 = vmatprep.subr.bf16.mxu0 0
        %700 = vmatpush2.bf16.msra.mxu0 0
        %701 = vmatprep.subr.bf16.mxu0 0
        %702 = vmatpush2.bf16.msra.mxu0 0
        %703 = vmatprep.subr.bf16.mxu0 0
        %704 = vmatpush2.bf16.msra.mxu0 0
        %705 = vmatprep.subr.bf16.mxu0 0
        %706 = vmatpush2.bf16.msra.mxu0 0
        %707 = vmatprep.subr.bf16.mxu0 0
        %708 = vmatpush2.bf16.msra.mxu0 0
        %709 = vmatprep.subr.bf16.mxu0 0
        %710 = vmatpush2.bf16.msra.mxu0 0
        %711 = vmatprep.mubr.bf16.mxu0 0
        %712 = vmatmul.mubr.bf16.gmra.mxu0 %v678
        %v713 = vpop.f32.mrf.mxu0
        %v714 = vadd.f32 0.0, %v713
        %v715 = vpop.f32.mrf.mxu0
        %v716 = vpop.f32.mrf.mxu0
        %v717 = vpop.f32.mrf.mxu0
        %718 = vdwg.mxu0
        %v719 = vadd.f32 %v677, %v714
        %v720 = vtanh.pop %v719
        %s721 = scalar_lea.vmem %s335, 48 [#allocation4]
        %v722 = vld [vmem:[%s721] sm:$0xff]
        %v723 = vpack.c.bf16 %v720, %v720
        %724 = vmatprep.subr.bf16.mxu0 0
        %725 = vmatpush1.bf16.msra.mxu0 %v445
        %726 = vmatprep.subr.bf16.mxu0 0
        %727 = vmatpush1.bf16.msra.mxu0 %v444
        %728 = vmatprep.subr.bf16.mxu0 0
        %729 = vmatpush1.bf16.msra.mxu0 %v443
        %730 = vmatprep.subr.bf16.mxu0 0
        %731 = vmatpush1.bf16.msra.mxu0 %v442
        %732 = vmatprep.subr.bf16.mxu0 0
        %733 = vmatpush1.bf16.msra.mxu0 %v441
        %734 = vmatprep.subr.bf16.mxu0 0
        %735 = vmatpush1.bf16.msra.mxu0 %v440
        %736 = vmatprep.subr.bf16.mxu0 0
        %737 = vmatpush1.bf16.msra.mxu0 %v439
        %738 = vmatprep.subr.bf16.mxu0 0
        %739 = vmatpush1.bf16.msra.mxu0 %v438
        %740 = vmatprep.subr.bf16.mxu0 0
        %741 = vmatpush2.bf16.msra.mxu0 0
        %742 = vmatprep.subr.bf16.mxu0 0
        %743 = vmatpush2.bf16.msra.mxu0 0
        %744 = vmatprep.subr.bf16.mxu0 0
        %745 = vmatpush2.bf16.msra.mxu0 0
        %746 = vmatprep.subr.bf16.mxu0 0
        %747 = vmatpush2.bf16.msra.mxu0 0
        %748 = vmatprep.subr.bf16.mxu0 0
        %749 = vmatpush2.bf16.msra.mxu0 0
        %750 = vmatprep.subr.bf16.mxu0 0
        %751 = vmatpush2.bf16.msra.mxu0 0
        %752 = vmatprep.subr.bf16.mxu0 0
        %753 = vmatpush2.bf16.msra.mxu0 0
        %754 = vmatprep.subr.bf16.mxu0 0
        %755 = vmatpush2.bf16.msra.mxu0 0
        %756 = vmatprep.mubr.bf16.mxu0 0
        %757 = vmatmul.mubr.bf16.gmra.mxu0 %v723
        %v758 = vpop.f32.mrf.mxu0
        %v759 = vadd.f32 0.0, %v758
        %v760 = vpop.f32.mrf.mxu0
        %v761 = vpop.f32.mrf.mxu0
        %v762 = vpop.f32.mrf.mxu0
        %763 = vdwg.mxu0
        %v764 = vadd.f32 %v722, %v759
        %v765 = vtanh.pop %v764
        %s766 = scalar_lea.vmem %s335, 56 [#allocation4]
        %v767 = vld [vmem:[%s766] sm:$0xff]
        %v768 = vpack.c.bf16 %v765, %v765
        %769 = vmatprep.subr.bf16.mxu0 0
        %770 = vmatpush1.bf16.msra.mxu0 %v445
        %771 = vmatprep.subr.bf16.mxu0 0
        %772 = vmatpush1.bf16.msra.mxu0 %v444
        %773 = vmatprep.subr.bf16.mxu0 0
        %774 = vmatpush1.bf16.msra.mxu0 %v443
        %775 = vmatprep.subr.bf16.mxu0 0
        %776 = vmatpush1.bf16.msra.mxu0 %v442
        %777 = vmatprep.subr.bf16.mxu0 0
        %778 = vmatpush1.bf16.msra.mxu0 %v441
        %779 = vmatprep.subr.bf16.mxu0 0
        %780 = vmatpush1.bf16.msra.mxu0 %v440
        %781 = vmatprep.subr.bf16.mxu0 0
        %782 = vmatpush1.bf16.msra.mxu0 %v439
        %783 = vmatprep.subr.bf16.mxu0 0
        %784 = vmatpush1.bf16.msra.mxu0 %v438
        %785 = vmatprep.subr.bf16.mxu0 0
        %786 = vmatpush2.bf16.msra.mxu0 0
        %787 = vmatprep.subr.bf16.mxu0 0
        %788 = vmatpush2.bf16.msra.mxu0 0
        %789 = vmatprep.subr.bf16.mxu0 0
        %790 = vmatpush2.bf16.msra.mxu0 0
        %791 = vmatprep.subr.bf16.mxu0 0
        %792 = vmatpush2.bf16.msra.mxu0 0
        %793 = vmatprep.subr.bf16.mxu0 0
        %794 = vmatpush2.bf16.msra.mxu0 0
        %795 = vmatprep.subr.bf16.mxu0 0
        %796 = vmatpush2.bf16.msra.mxu0 0
        %797 = vmatprep.subr.bf16.mxu0 0
        %798 = vmatpush2.bf16.msra.mxu0 0
        %799 = vmatprep.subr.bf16.mxu0 0
        %800 = vmatpush2.bf16.msra.mxu0 0
        %801 = vmatprep.mubr.bf16.mxu0 0
        %802 = vmatmul.mubr.bf16.gmra.mxu0 %v768
        %v803 = vpop.f32.mrf.mxu0
        %v804 = vadd.f32 0.0, %v803
        %v805 = vpop.f32.mrf.mxu0
        %v806 = vpop.f32.mrf.mxu0
        %v807 = vpop.f32.mrf.mxu0
        %808 = vdwg.mxu0
        %v809 = vadd.f32 %v767, %v804
        %v810 = vtanh.pop %v809
        %811 = vst [vmem:[#allocation2] sm:$0xff] %v810
        %v812 = vld [vmem:[%s4] sm:$0x1]
        %v814 = vlaneseq
        %v815 = vshrl.u32 %v814, 7
        %v816 = vsub.s32 0, %v815
        %v817 = vrot.slane %v812, %v816
        %v819 = vmul.f32 %v495, %v817
        %v820 = vmul.f32 %v540, %v817
        %v821 = vmul.f32 %v585, %v817
        %v822 = vmul.f32 %v630, %v817
        %v823 = vmul.f32 %v675, %v817
        %v824 = vmul.f32 %v720, %v817
        %v825 = vmul.f32 %v765, %v817
        %v826 = vmul.f32 %v810, %v817
        %827 = vadd.xlane.f32.xlu0 %v819
        %v828 = vpop.xlane.xlu0 %827
        %829 = vadd.xlane.f32.xlu0 %v820
        %v830 = vpop.xlane.xlu0 %829
        %831 = vadd.xlane.f32.xlu0 %v821
        %v832 = vpop.xlane.xlu0 %831
        %833 = vadd.xlane.f32.xlu0 %v822
        %v834 = vpop.xlane.xlu0 %833
        %835 = vadd.xlane.f32.xlu0 %v823
        %v836 = vpop.xlane.xlu0 %835
        %837 = vadd.xlane.f32.xlu0 %v824
        %v838 = vpop.xlane.xlu0 %837
        %839 = vadd.xlane.f32.xlu0 %v825
        %v840 = vpop.xlane.xlu0 %839
        %841 = vadd.xlane.f32.xlu0 %v826
        %v842 = vpop.xlane.xlu0 %841
        %v843 = vld [vmem:[#allocation3] sm:$0x1]
        %v845 = vlaneseq
        %v846 = vshrl.u32 %v845, 7
        %v847 = vsub.s32 0, %v846
        %v848 = vrot.slane %v843, %v847
        %849 = vset.pattern.permute.xlu0 0
        %850 = vperm.xlu0 %849, %v848
        %v851 = vpop.permute.xlu0 %850
        %v853 = vadd.f32 %v828, %v851
        %v854 = vadd.f32 %v830, %v851
        %v855 = vadd.f32 %v832, %v851
        %v856 = vadd.f32 %v834, %v851
        %v857 = vadd.f32 %v836, %v851
        %v858 = vadd.f32 %v838, %v851
        %v859 = vadd.f32 %v840, %v851
        %v860 = vadd.f32 %v842, %v851
        %v861 = vxor.u32 %v853, 2147483648
        %v862 = vxor.u32 %v854, 2147483648
        %v863 = vxor.u32 %v855, 2147483648
        %v864 = vxor.u32 %v856, 2147483648
        %v865 = vxor.u32 %v857, 2147483648
        %v866 = vxor.u32 %v858, 2147483648
        %v867 = vxor.u32 %v859, 2147483648
        %v868 = vxor.u32 %v860, 2147483648
        %v869 = vmul.f32 %v861, 1.442695
        %v870 = vpow.pop %v869
        %v871 = vmul.f32 %v862, 1.442695
        %v872 = vpow.pop %v871
        %v873 = vmul.f32 %v863, 1.442695
        %v874 = vpow.pop %v873
        %v875 = vmul.f32 %v864, 1.442695
        %v876 = vpow.pop %v875
        %v877 = vmul.f32 %v865, 1.442695
        %v878 = vpow.pop %v877
        %v879 = vmul.f32 %v866, 1.442695
        %v880 = vpow.pop %v879
        %v881 = vmul.f32 %v867, 1.442695
        %v882 = vpow.pop %v881
        %v883 = vmul.f32 %v868, 1.442695
        %v884 = vpow.pop %v883
        %v885 = vadd.f32 %v870, 1.0
        %v886 = vadd.f32 %v872, 1.0
        %v887 = vadd.f32 %v874, 1.0
        %v888 = vadd.f32 %v876, 1.0
        %v889 = vadd.f32 %v878, 1.0
        %v890 = vadd.f32 %v880, 1.0
        %v891 = vadd.f32 %v882, 1.0
        %v892 = vadd.f32 %v884, 1.0
        %v893 = vrcp.pop %v885
        %v894 = vmul.f32 1.0, %v893
        %v895 = vrcp.pop %v886
        %v896 = vmul.f32 1.0, %v895
        %v897 = vrcp.pop %v887
        %v898 = vmul.f32 1.0, %v897
        %v899 = vrcp.pop %v888
        %v900 = vmul.f32 1.0, %v899
        %v901 = vrcp.pop %v889
        %v902 = vmul.f32 1.0, %v901
        %v903 = vrcp.pop %v890
        %v904 = vmul.f32 1.0, %v903
        %v905 = vrcp.pop %v891
        %v906 = vmul.f32 1.0, %v905
        %v907 = vrcp.pop %v892
        %v908 = vmul.f32 1.0, %v907
        %v917 = vlaneseq
        %v918 = vand.u32 %v917, 127
        %v919 = vlaneseq
        %v920 = vshrl.u32 %v919, 7
        %v921 = vsub.s32 %v918, %v920
        %v922 = vrot.slane %v894, %v921
        %v923 = vlaneseq
        %v924 = vshrl.u32 %v923, 7
        %v925 = vsub.s32 %v918, %v924
        %v926 = vrot.slane %v896, %v925
        %v927 = vlaneseq
        %v928 = vshrl.u32 %v927, 7
        %v929 = vsub.s32 %v918, %v928
        %v930 = vrot.slane %v898, %v929
        %v931 = vlaneseq
        %v932 = vshrl.u32 %v931, 7
        %v933 = vsub.s32 %v918, %v932
        %v934 = vrot.slane %v900, %v933
        %v935 = vlaneseq
        %v936 = vshrl.u32 %v935, 7
        %v937 = vsub.s32 %v918, %v936
        %v938 = vrot.slane %v902, %v937
        %v939 = vlaneseq
        %v940 = vshrl.u32 %v939, 7
        %v941 = vsub.s32 %v918, %v940
        %v942 = vrot.slane %v904, %v941
        %v943 = vlaneseq
        %v944 = vshrl.u32 %v943, 7
        %v945 = vsub.s32 %v918, %v944
        %v946 = vrot.slane %v906, %v945
        %v947 = vlaneseq
        %v948 = vshrl.u32 %v947, 7
        %v949 = vsub.s32 %v918, %v948
        %v950 = vrot.slane %v908, %v949
        %vm951 = vcmask 1041409
        %v952 = vsel %vm951, %v926, %v922
        %vm953 = vcmask 1042434
        %v954 = vsel %vm953, %v930, %v952
        %vm955 = vcmask 1043459
        %v956 = vsel %vm955, %v934, %v954
        %vm957 = vcmask 1044484
        %v958 = vsel %vm957, %v938, %v956
        %vm959 = vcmask 1045509
        %v960 = vsel %vm959, %v942, %v958
        %vm961 = vcmask 1046534
        %v962 = vsel %vm961, %v946, %v960
        %vm963 = vcmask 1047559
        %v964 = vsel %vm963, %v950, %v962
        %vm966 = vcmask 64512
        %967 = vst.msk [vmem:[%s380] sm:$0xff] %vm966, %v964
        %p968 = scmp.eq.s32.totalorder %s29, 1
        // Predicated region
        $region87: #{rnn_sequence.1} parent=77 // pred_check
          %p969 = pneg %p968
        $region88: #{rnn_sequence.1} parent=77 // pred_check_branch
          %971 = sbr.rel (%p969) target = $region90
        $region89: #{rnn_sequence.1} parent=77 // pred_region
          %v972 = vpack.c.bf16 %v810, %v810
          %v973 = vld [vmem:[%s2] sm:$0xf]
          %v974 = vld [vmem:[%s2 + $0x4] sm:$0xf]
          %v975 = vld [vmem:[%s2 + $0x8] sm:$0xf]
          %v976 = vld [vmem:[%s2 + $0xc] sm:$0xf]
          %v977 = vld [vmem:[%s2 + $0x10] sm:$0xf]
          %v978 = vld [vmem:[%s2 + $0x14] sm:$0xf]
          %v979 = vld [vmem:[%s2 + $0x18] sm:$0xf]
          %v980 = vld [vmem:[%s2 + $0x1c] sm:$0xf]
          %v981 = vld [vmem:[%s2 + $0x20] sm:$0xf]
          %v982 = vld [vmem:[%s2 + $0x24] sm:$0xf]
          %v983 = vld [vmem:[%s2 + $0x28] sm:$0xf]
          %v984 = vld [vmem:[%s2 + $0x2c] sm:$0xf]
          %v985 = vld [vmem:[%s2 + $0x30] sm:$0xf]
          %v986 = vld [vmem:[%s2 + $0x34] sm:$0xf]
          %v987 = vld [vmem:[%s2 + $0x38] sm:$0xf]
          %v988 = vld [vmem:[%s2 + $0x3c] sm:$0xf]
          %v989 = vld [vmem:[%s3] sm:$0x1]
          %v991 = vlaneseq
          %v992 = vshrl.u32 %v991, 7
          %v993 = vsub.s32 0, %v992
          %v994 = vrot.slane %v989, %v993
          %v1012 = vunpack.c.l.b16 %v973
          %v1013 = vunpack.c.l.b16 %v974
          %v1014 = vunpack.c.l.b16 %v975
          %v1015 = vunpack.c.l.b16 %v976
          %v1016 = vunpack.c.l.b16 %v977
          %v1017 = vunpack.c.l.b16 %v978
          %v1018 = vunpack.c.l.b16 %v979
          %v1019 = vunpack.c.l.b16 %v980
          %v1020 = vunpack.c.l.b16 %v981
          %v1021 = vunpack.c.l.b16 %v982
          %v1022 = vunpack.c.l.b16 %v983
          %v1023 = vunpack.c.l.b16 %v984
          %v1024 = vunpack.c.l.b16 %v985
          %v1025 = vunpack.c.l.b16 %v986
          %v1026 = vunpack.c.l.b16 %v987
          %v1027 = vunpack.c.l.b16 %v988
          %v1028 = vpack.c.b16 %v1013, %v1012
          %v1029 = vpack.c.b16 %v1015, %v1014
          %v1030 = vpack.c.b16 %v1017, %v1016
          %v1031 = vpack.c.b16 %v1019, %v1018
          %v1032 = vpack.c.b16 %v1021, %v1020
          %v1033 = vpack.c.b16 %v1023, %v1022
          %v1034 = vpack.c.b16 %v1025, %v1024
          %v1035 = vpack.c.b16 %v1027, %v1026
          %1044 = vmatprep.subr.bf16.mxu0 0
          %1045 = vmatpush1.bf16.msra.mxu0 %v1035
          %1046 = vmatprep.subr.bf16.mxu0 0
          %1047 = vmatpush1.bf16.msra.mxu0 %v1034
          %1048 = vmatprep.subr.bf16.mxu0 0
          %1049 = vmatpush1.bf16.msra.mxu0 %v1033
          %1050 = vmatprep.subr.bf16.mxu0 0
          %1051 = vmatpush1.bf16.msra.mxu0 %v1032
          %1052 = vmatprep.subr.bf16.mxu0 0
          %1053 = vmatpush1.bf16.msra.mxu0 %v1031
          %1054 = vmatprep.subr.bf16.mxu0 0
          %1055 = vmatpush1.bf16.msra.mxu0 %v1030
          %1056 = vmatprep.subr.bf16.mxu0 0
          %1057 = vmatpush1.bf16.msra.mxu0 %v1029
          %1058 = vmatprep.subr.bf16.mxu0 0
          %1059 = vmatpush1.bf16.msra.mxu0 %v1028
          %1060 = vmatprep.subr.bf16.mxu0 0
          %1061 = vmatpush2.bf16.msra.mxu0 0
          %1062 = vmatprep.subr.bf16.mxu0 0
          %1063 = vmatpush2.bf16.msra.mxu0 0
          %1064 = vmatprep.subr.bf16.mxu0 0
          %1065 = vmatpush2.bf16.msra.mxu0 0
          %1066 = vmatprep.subr.bf16.mxu0 0
          %1067 = vmatpush2.bf16.msra.mxu0 0
          %1068 = vmatprep.subr.bf16.mxu0 0
          %1069 = vmatpush2.bf16.msra.mxu0 0
          %1070 = vmatprep.subr.bf16.mxu0 0
          %1071 = vmatpush2.bf16.msra.mxu0 0
          %1072 = vmatprep.subr.bf16.mxu0 0
          %1073 = vmatpush2.bf16.msra.mxu0 0
          %1074 = vmatprep.subr.bf16.mxu0 0
          %1075 = vmatpush2.bf16.msra.mxu0 0
          %1076 = vmatprep.mubr.bf16.mxu0 0
          %1077 = vmatmul.mubr.bf16.gmra.mxu0 %v972
          %v1078 = vpop.f32.mrf.mxu0
          %v1079 = vadd.f32 %v994, %v1078
          %v1080 = vpop.f32.mrf.mxu0
          %v1081 = vpop.f32.mrf.mxu0
          %v1082 = vpop.f32.mrf.mxu0
          %1083 = vdwg.mxu0
          %1084 = vst [vmem:[%s371] sm:$0xff] %v1079
        $region90: #{rnn_sequence.1} parent=77 // pred_fallthru
          _
        %p1085 = scmp.lt.s32.totalorder %s28, 1
        %s1086 = scalar_select %p1085, %s28, 1
        %p1087 = scmp.lt.s32.totalorder %s29, 1
        %s1088 = scalar_select %p1087, %s29, 1
        %s1089 = smul.addr %s1086, 2
        %s1090 = sadd.s32 %s1088, %s1089
        %s1091 = smul.addr %s1090, 8
        %s1092 = scalar_lea.vmem %s6, %s1091
        %s1093 = sand.u32 %s205, 1
        %s1094 = scalar_lea.sflag [#allocation6], %s1093
        %s1095 = sand.u32 %s205, 1
        %s1096 = smul.addr %s1095, 8
        %s1097 = scalar_lea.vmem [#allocation5], %s1096
        // Predicated region
        $region91: #{rnn_sequence.1} parent=77 // pred_check
          %p1098 = pneg %p189
        $region92: #{rnn_sequence.1} parent=77 // pred_check_branch
          %1100 = sbr.rel (%p1098) target = $region94
        $region93: #{rnn_sequence.1} parent=77 // pred_region
          _
        $region94: #{rnn_sequence.1} parent=77 // pred_fallthru
          _
        // Predicated region
        $region95: #{rnn_sequence.1} parent=77 // pred_check
          %p1101 = pneg %p215
        $region96: #{rnn_sequence.1} parent=77 // pred_check_branch
          %1103 = sbr.rel (%p1101) target = $region98
        $region97: #{rnn_sequence.1} parent=77 // pred_region
          %s1105 = ssub.s32 128, 128
          %1106 = vsyncadd %s1094, %s1105
          %s1107 = smul.addr %s28, 128
          %s1108 = scalar_lea.hbm %s7, %s1107
          %s1110 = sshll.u32 %s1097, 4
          %s1111 = int_to_ptr.vmem [resolvable:$true] %s1110
          %1113 = dma.vmem_to_hbm [thread:$0]  %s1111, 128, %s1108, %s1094
        $region98: #{rnn_sequence.1} parent=77 // pred_fallthru
          _
      $region78: #{rnn_sequence.1} parent=5 // pred_fallthru
        _
      %p1114 = scmp.le.s32.totalorder 2, %s19
      // Predicated region
      $region99: #{rnn_sequence.1} parent=5 // pred_check
        %p1115 = pneg %p1114
      $region100: #{rnn_sequence.1} parent=5 // pred_check_branch
        %1117 = sbr.rel (%p1115) target = $region102
      $region101: #{rnn_sequence.1} parent=5 // pred_region
        %s1118 = ssub.s32 %s19, 2
        // Predicated region
        $region103: #{rnn_sequence.1} parent=101 // pred_check
          %p1119 = pneg %p195
        $region104: #{rnn_sequence.1} parent=101 // pred_check_branch
          %1121 = sbr.rel (%p1119) target = $region106
        $region105: #{rnn_sequence.1} parent=101 // pred_region
          %p1122 = scmp.lt.s32.totalorder %s30, 1
          %s1123 = scalar_select %p1122, %s30, 1
          %p1124 = scmp.lt.s32.totalorder %s31, 1
          %s1125 = scalar_select %p1124, %s31, 1
          %s1126 = smul.addr %s1123, 2
          %s1127 = sadd.s32 %s1125, %s1126
          %s1128 = smul.addr %s1127, 8
          %s1129 = scalar_lea.vmem %s6, %s1128
        $region106: #{rnn_sequence.1} parent=101 // pred_fallthru
          _
        // Predicated region
        $region107: #{rnn_sequence.1} parent=101 // pred_check
          %p1130 = pneg %p221
        $region108: #{rnn_sequence.1} parent=101 // pred_check_branch
          %1132 = sbr.rel (%p1130) target = $region110
        $region109: #{rnn_sequence.1} parent=101 // pred_region
          %s1133 = sand.u32 %s206, 1
          %s1134 = scalar_lea.sflag [#allocation6], %s1133
          %s1135 = sand.u32 %s206, 1
          %s1136 = smul.addr %s1135, 8
          %s1137 = scalar_lea.vmem [#allocation5], %s1136
          %1138 = dma.done %s1134, 128
        $region110: #{rnn_sequence.1} parent=101 // pred_fallthru
          _
      $region102: #{rnn_sequence.1} parent=5 // pred_fallthru
        _
    $region6: #{rnn_sequence.1} parent=1 // loop_footer
      %s23 = sadd.s32 1, %s19
    $region7: #{rnn_sequence.1} parent=1 // loop_footer_branch
      %18 = sbr.rel target = $region3
    $region8: #{rnn_sequence.1} parent=1 // loop_exit
      _
    %1139 = vsyncpa [#allocation6], 1
    %s1140 = scalar_lea.sflag [#allocation6], 1
    %1141 = vsyncpa %s1140, 1

</llo_original>
